<compile_context>
chip_gen: v5e
topology: v5e:2x2
jax: 0.10.0
libtpu: 0.0.40
codegen_flags: <defaults>
</compile_context>

<pallas_src>
import math
import functools

import jax
import jax.numpy as jnp
from jax.experimental import pallas as pl
from jax.experimental.pallas import tpu as pltpu


def _cross_attention_kernel(x_ref, ctx_ref,
                            wk_ref, bk_ref,
                            wq_ref, bq_ref,
                            wv_ref, bv_ref,
                            wp_ref, bp_ref,
                            qmask_ref, hmask_ref, bias_ref,
                            o_ref,
                            *, n_head: int, B: int, Tc: int):
    # x_ref:   (B*T,  C)   bf16        ctx_ref: (B*Tc, Dctx) bf16
    # wk/wv:   (C, C) bf16 (in,out)    wq: (Dctx, C) bf16    wp: (C, C) bf16
    # biases:  (1, C) f32
    # qmask/hmask: (H*B*Tc, C) f32     bias_ref: (H*B*Tc, B*T) f32
    # o_ref:   (B*Tc, C)
    x = x_ref[...]
    ctx = ctx_ref[...]

    # Fused (batch*seq)-M projections: bf16 MXU inputs, f32 accumulation.
    k = jnp.dot(x, wk_ref[...], preferred_element_type=jnp.float32) + bk_ref[...]
    q = jnp.dot(ctx, wq_ref[...], preferred_element_type=jnp.float32) + bq_ref[...]
    v = jnp.dot(x, wv_ref[...], preferred_element_type=jnp.float32) + bv_ref[...]

    # Stack all heads along sublanes: rows ordered (head, batch, query).
    q_stack = jnp.concatenate([q] * n_head, axis=0)              # (H*B*Tc, C)
    q_h = (q_stack * qmask_ref[...]).astype(jnp.bfloat16)        # own-head channels * 1/sqrt(hd)
    kb = k.astype(jnp.bfloat16)

    # All heads' logits in one NT contraction (no explicit transpose).
    att = jax.lax.dot_general(
        q_h, kb, (((1,), (1,)), ((), ())),
        preferred_element_type=jnp.float32)                      # (H*B*Tc, B*T)
    att = att + bias_ref[...]                                    # -1e30 on cross-batch keys

    # Softmax over keys, f32 math; divide moved to the EUP.
    att = att - jnp.max(att, axis=-1, keepdims=True)
    p = jnp.exp(att)
    p = p * pl.reciprocal(jnp.sum(p, axis=-1, keepdims=True), approx=True)
    # attn_drop: identity (eval mode)

    # Attention-weighted values for all heads at once (f32).
    y = jnp.dot(p, v, preferred_element_type=jnp.float32)        # (H*B*Tc, C)
    y = y * hmask_ref[...]                                       # keep only own head's channels

    # Fold "concat heads" back to (B*Tc, C): sum of the per-head row blocks.
    btc = B * Tc
    y_cat = y[0:btc]
    for h in range(1, n_head):
        y_cat = y_cat + y[h * btc:(h + 1) * btc]

    # Output projection (weights stored/DMA'd as bf16, math in f32).
    out = jnp.dot(y_cat, wp_ref[...].astype(jnp.float32),
                  preferred_element_type=jnp.float32) + bp_ref[...]
    # resid_drop: identity (eval mode)
    o_ref[...] = out.astype(o_ref.dtype)


def cross_attention(x, context, params, n_head):
    """x: (B, T, C), context: (B, Tc, Dctx) -> (B, Tc, C)."""
    B, T, C = x.shape
    _, Tc, Dctx = context.shape
    hd = C // n_head
    scale = 1.0 / math.sqrt(hd)

    # PyTorch (out, in) weights -> (in, out); matmul operands in bf16.
    wk = params["key_w"].T.astype(jnp.bfloat16)
    wq = params["query_w"].T.astype(jnp.bfloat16)
    wv = params["value_w"].T.astype(jnp.bfloat16)
    wp = params["proj_w"].T.astype(jnp.bfloat16)
    bk = params["key_b"].reshape(1, C).astype(jnp.float32)
    bq = params["query_b"].reshape(1, C).astype(jnp.float32)
    bv = params["value_b"].reshape(1, C).astype(jnp.float32)
    bp = params["proj_b"].reshape(1, C).astype(jnp.float32)

    # Batch/seq fused into the matmul M dimension (done outside the kernel: free).
    x2 = x.reshape(B * T, C).astype(jnp.bfloat16)
    ctx2 = context.reshape(B * Tc, Dctx).astype(jnp.bfloat16)

    # Head / batch masks, computed once in plain JAX.
    rows = jnp.arange(n_head * B * Tc)
    head_of_row = rows // (B * Tc)
    batch_of_row = (rows // Tc) % B
    head_of_col = jnp.arange(C) // hd
    hmask = (head_of_row[:, None] == head_of_col[None, :]).astype(jnp.float32)
    qmask = hmask * scale
    batch_of_key = jnp.arange(B * T) // T
    attn_bias = jnp.where(batch_of_row[:, None] == batch_of_key[None, :],
                          0.0, -1e30).astype(jnp.float32)

    kernel = functools.partial(_cross_attention_kernel,
                               n_head=n_head, B=B, Tc=Tc)
    operands = (x2, ctx2, wk, bk, wq, bq, wv, bv, wp, bp, qmask, hmask, attn_bias)

    out_flat = pl.pallas_call(
        kernel,
        out_shape=jax.ShapeDtypeStruct((B * Tc, C), x.dtype),
        in_specs=[pl.BlockSpec(memory_space=pltpu.MemorySpace.VMEM)
                  for _ in operands],
        out_specs=pl.BlockSpec(memory_space=pltpu.MemorySpace.VMEM),
    )(*operands)
    return out_flat.reshape(B, Tc, C)


def _reference(x, context, params, n_head):
    """Pure-JAX reference mirroring the PyTorch forward (eval mode)."""
    B, T, C = x.shape
    hd = C // n_head
    k = x @ params["key_w"].T + params["key_b"]
    q = context @ params["query_w"].T + params["query_b"]
    v = x @ params["value_w"].T + params["value_b"]
    k = k.reshape(B, T, n_head, hd).transpose(0, 2, 1, 3)
    q = q.reshape(B, -1, n_head, hd).transpose(0, 2, 1, 3)
    v = v.reshape(B, T, n_head, hd).transpose(0, 2, 1, 3)
    att = jnp.einsum("bhqd,bhkd->bhqk", q, k) / math.sqrt(hd)
    att = jax.nn.softmax(att, axis=-1)
    y = jnp.einsum("bhqk,bhkd->bhqd", att, v)
    y = y.transpose(0, 2, 1, 3).reshape(B, -1, C)
    return y @ params["proj_w"].T + params["proj_b"]


if __name__ == "__main__":
    # Config: n_embd=32, n_head=4, context_dim=16, attn_pdrop=resid_pdrop=0.
    B, T, Tc = 2, 8, 8
    C, Dctx, n_head = 32, 16, 4

    key = jax.random.PRNGKey(0)
    ks = jax.random.split(key, 10)
    init = lambda k, shape, fan_in: (jax.random.normal(k, shape, jnp.float32)
                                     / math.sqrt(fan_in))
    params = {
        "key_w":   init(ks[0], (C, C), C),
        "key_b":   init(ks[1], (C,), C),
        "query_w": init(ks[2], (C, Dctx), Dctx),
        "query_b": init(ks[3], (C,), Dctx),
        "value_w": init(ks[4], (C, C), C),
        "value_b": init(ks[5], (C,), C),
        "proj_w":  init(ks[6], (C, C), C),
        "proj_b":  init(ks[7], (C,), C),
    }

    x = jax.random.normal(ks[8], (B, T, C), jnp.float32)
    context = jax.random.normal(ks[9], (B, Tc, Dctx), jnp.float32)

    out = cross_attention(x, context, params, n_head)
    out = jax.block_until_ready(out)

    # Reference with the same bf16 rounding of matmul operands the kernel uses
    # (accumulation stays f32), so the comparison isolates kernel correctness.
    rnd = lambda a: a.astype(jnp.bfloat16).astype(jnp.float32)
    params_r = dict(params)
    for name in ("key_w", "query_w", "value_w", "proj_w"):
        params_r[name] = rnd(params[name])
    ref = _reference(rnd(x), rnd(context), params_r, n_head)

    assert out.shape == (B, Tc, C)
    assert jnp.allclose(out, ref, atol=5e-2, rtol=5e-2), "mismatch vs reference"

    print("KERNEL_OK")
</pallas_src>

<mosaic_0001>
module attributes {stable_mosaic.version = 11 : i64} {
  func.func @_cross_attention_kernel(%arg0: memref<16x32xbf16, #tpu.memory_space<vmem>>, %arg1: memref<16x16xbf16, #tpu.memory_space<vmem>>, %arg2: memref<32x32xbf16, #tpu.memory_space<vmem>>, %arg3: memref<1x32xf32, #tpu.memory_space<vmem>>, %arg4: memref<16x32xbf16, #tpu.memory_space<vmem>>, %arg5: memref<1x32xf32, #tpu.memory_space<vmem>>, %arg6: memref<32x32xbf16, #tpu.memory_space<vmem>>, %arg7: memref<1x32xf32, #tpu.memory_space<vmem>>, %arg8: memref<32x32xbf16, #tpu.memory_space<vmem>>, %arg9: memref<1x32xf32, #tpu.memory_space<vmem>>, %arg10: memref<64x32xf32, #tpu.memory_space<vmem>>, %arg11: memref<64x32xf32, #tpu.memory_space<vmem>>, %arg12: memref<64x16xf32, #tpu.memory_space<vmem>>, %arg13: memref<16x32xf32, #tpu.memory_space<vmem>>) attributes {dimension_semantics = [], scalar_prefetch = 0 : i64, scratch_operands = 0 : i64, tpu.core_type = #tpu.core_type<tc>} {
    %c0 = arith.constant 0 : index
    %c0_0 = arith.constant 0 : index
    %0 = vector.load %arg0[%c0, %c0_0] : memref<16x32xbf16, #tpu.memory_space<vmem>>, vector<16x32xbf16>
    %c0_1 = arith.constant 0 : index
    %c0_2 = arith.constant 0 : index
    %1 = vector.load %arg1[%c0_1, %c0_2] : memref<16x16xbf16, #tpu.memory_space<vmem>>, vector<16x16xbf16>
    %c0_3 = arith.constant 0 : index
    %c0_4 = arith.constant 0 : index
    %2 = vector.load %arg2[%c0_3, %c0_4] : memref<32x32xbf16, #tpu.memory_space<vmem>>, vector<32x32xbf16>
    %cst = arith.constant dense<0.000000e+00> : vector<16x32xf32>
    %3 = tpu.matmul %0, %2, %cst {dimension_numbers = #tpu.dot_dimension_numbers<[1], [0], [0], [1], [0, 0, 1, 1], [], []>} : vector<16x32xbf16>, vector<32x32xbf16>, vector<16x32xf32> -> vector<16x32xf32>
    %c0_5 = arith.constant 0 : index
    %c0_6 = arith.constant 0 : index
    %4 = vector.load %arg3[%c0_5, %c0_6] : memref<1x32xf32, #tpu.memory_space<vmem>>, vector<1x32xf32>
    %5 = vector.broadcast %4 : vector<1x32xf32> to vector<16x32xf32>
    %6 = arith.addf %3, %5 : vector<16x32xf32>
    %c0_7 = arith.constant 0 : index
    %c0_8 = arith.constant 0 : index
    %7 = vector.load %arg4[%c0_7, %c0_8] : memref<16x32xbf16, #tpu.memory_space<vmem>>, vector<16x32xbf16>
    %cst_9 = arith.constant dense<0.000000e+00> : vector<16x32xf32>
    %8 = tpu.matmul %1, %7, %cst_9 {dimension_numbers = #tpu.dot_dimension_numbers<[1], [0], [0], [1], [0, 0, 1, 1], [], []>} : vector<16x16xbf16>, vector<16x32xbf16>, vector<16x32xf32> -> vector<16x32xf32>
    %c0_10 = arith.constant 0 : index
    %c0_11 = arith.constant 0 : index
    %9 = vector.load %arg5[%c0_10, %c0_11] : memref<1x32xf32, #tpu.memory_space<vmem>>, vector<1x32xf32>
    %10 = vector.broadcast %9 : vector<1x32xf32> to vector<16x32xf32>
    %11 = arith.addf %8, %10 : vector<16x32xf32>
    %c0_12 = arith.constant 0 : index
    %c0_13 = arith.constant 0 : index
    %12 = vector.load %arg6[%c0_12, %c0_13] : memref<32x32xbf16, #tpu.memory_space<vmem>>, vector<32x32xbf16>
    %cst_14 = arith.constant dense<0.000000e+00> : vector<16x32xf32>
    %13 = tpu.matmul %0, %12, %cst_14 {dimension_numbers = #tpu.dot_dimension_numbers<[1], [0], [0], [1], [0, 0, 1, 1], [], []>} : vector<16x32xbf16>, vector<32x32xbf16>, vector<16x32xf32> -> vector<16x32xf32>
    %c0_15 = arith.constant 0 : index
    %c0_16 = arith.constant 0 : index
    %14 = vector.load %arg7[%c0_15, %c0_16] : memref<1x32xf32, #tpu.memory_space<vmem>>, vector<1x32xf32>
    %15 = vector.broadcast %14 : vector<1x32xf32> to vector<16x32xf32>
    %16 = arith.addf %13, %15 : vector<16x32xf32>
    %17 = tpu.concatenate %11, %11, %11, %11 in 0 : vector<16x32xf32>, vector<16x32xf32>, vector<16x32xf32>, vector<16x32xf32> -> vector<64x32xf32>
    %c0_17 = arith.constant 0 : index
    %c0_18 = arith.constant 0 : index
    %18 = vector.load %arg10[%c0_17, %c0_18] : memref<64x32xf32, #tpu.memory_space<vmem>>, vector<64x32xf32>
    %19 = arith.mulf %17, %18 : vector<64x32xf32>
    %20 = arith.truncf %19 : vector<64x32xf32> to vector<64x32xbf16>
    %21 = arith.truncf %6 : vector<16x32xf32> to vector<16x32xbf16>
    %cst_19 = arith.constant dense<0.000000e+00> : vector<64x16xf32>
    %22 = tpu.matmul %20, %21, %cst_19 {dimension_numbers = #tpu.dot_dimension_numbers<[1], [1], [0], [0], [0, 0, 1, 0], [], []>} : vector<64x32xbf16>, vector<16x32xbf16>, vector<64x16xf32> -> vector<64x16xf32>
    %c0_20 = arith.constant 0 : index
    %c0_21 = arith.constant 0 : index
    %23 = vector.load %arg12[%c0_20, %c0_21] : memref<64x16xf32, #tpu.memory_space<vmem>>, vector<64x16xf32>
    %24 = arith.addf %22, %23 : vector<64x16xf32>
    %cst_22 = arith.constant dense<0xFF800000> : vector<64xf32>
    %25 = vector.multi_reduction <maximumf>, %24, %cst_22 [1] : vector<64x16xf32> to vector<64xf32>
    %26 = vector.shape_cast %25 : vector<64xf32> to vector<64x1xf32>
    %27 = vector.broadcast %26 : vector<64x1xf32> to vector<64x16xf32>
    %28 = arith.subf %24, %27 : vector<64x16xf32>
    %29 = math.exp %28 : vector<64x16xf32>
    %cst_23 = arith.constant dense<0.000000e+00> : vector<64xf32>
    %30 = vector.multi_reduction <add>, %29, %cst_23 [1] : vector<64x16xf32> to vector<64xf32>
    %31 = vector.shape_cast %30 : vector<64xf32> to vector<64x1xf32>
    %32 = tpu.reciprocal %31 {approx = true} : vector<64x1xf32> -> vector<64x1xf32>
    %33 = vector.broadcast %32 : vector<64x1xf32> to vector<64x16xf32>
    %34 = arith.mulf %29, %33 : vector<64x16xf32>
    %cst_24 = arith.constant dense<0.000000e+00> : vector<64x32xf32>
    %35 = tpu.matmul %34, %16, %cst_24 {dimension_numbers = #tpu.dot_dimension_numbers<[1], [0], [0], [1], [0, 0, 1, 1], [], []>} : vector<64x16xf32>, vector<16x32xf32>, vector<64x32xf32> -> vector<64x32xf32>
    %c0_25 = arith.constant 0 : index
    %c0_26 = arith.constant 0 : index
    %36 = vector.load %arg11[%c0_25, %c0_26] : memref<64x32xf32, #tpu.memory_space<vmem>>, vector<64x32xf32>
    %37 = arith.mulf %35, %36 : vector<64x32xf32>
    %38 = vector.extract_strided_slice %37 {offsets = [0, 0], sizes = [16, 32], strides = [1, 1]} : vector<64x32xf32> to vector<16x32xf32>
    %39 = vector.extract_strided_slice %37 {offsets = [16, 0], sizes = [16, 32], strides = [1, 1]} : vector<64x32xf32> to vector<16x32xf32>
    %40 = arith.addf %38, %39 : vector<16x32xf32>
    %41 = vector.extract_strided_slice %37 {offsets = [32, 0], sizes = [16, 32], strides = [1, 1]} : vector<64x32xf32> to vector<16x32xf32>
    %42 = arith.addf %40, %41 : vector<16x32xf32>
    %43 = vector.extract_strided_slice %37 {offsets = [48, 0], sizes = [16, 32], strides = [1, 1]} : vector<64x32xf32> to vector<16x32xf32>
    %44 = arith.addf %42, %43 : vector<16x32xf32>
    %c0_27 = arith.constant 0 : index
    %c0_28 = arith.constant 0 : index
    %45 = vector.load %arg8[%c0_27, %c0_28] : memref<32x32xbf16, #tpu.memory_space<vmem>>, vector<32x32xbf16>
    %46 = arith.extf %45 : vector<32x32xbf16> to vector<32x32xf32>
    %cst_29 = arith.constant dense<0.000000e+00> : vector<16x32xf32>
    %47 = tpu.matmul %44, %46, %cst_29 {dimension_numbers = #tpu.dot_dimension_numbers<[1], [0], [0], [1], [0, 0, 1, 1], [], []>} : vector<16x32xf32>, vector<32x32xf32>, vector<16x32xf32> -> vector<16x32xf32>
    %c0_30 = arith.constant 0 : index
    %c0_31 = arith.constant 0 : index
    %48 = vector.load %arg9[%c0_30, %c0_31] : memref<1x32xf32, #tpu.memory_space<vmem>>, vector<1x32xf32>
    %49 = vector.broadcast %48 : vector<1x32xf32> to vector<16x32xf32>
    %50 = arith.addf %47, %49 : vector<16x32xf32>
    %c0_32 = arith.constant 0 : index
    %c0_33 = arith.constant 0 : index
    %51 = vector.load %arg13[%c0_32, %c0_33] : memref<16x32xf32, #tpu.memory_space<vmem>>, vector<16x32xf32>
    tpu.vector_store %arg13[%c0_32, %c0_33], %50 {strides = array<i32>} : memref<16x32xf32, #tpu.memory_space<vmem>>, vector<16x32xf32>,
    return
  }
}

</mosaic_0001>

<llo_original>
// kernel: tpu_custom_call.1
$region0: #{tpu_custom_call.1}
  #allocation0 [shape = 'u32[]', space=smem, size = 0x4, offset = 0x4, fixed_abs, tag = 'smem constant byte address 0x4 - core index']
  #allocation1 [shape = 'u32[72,128]{1,0:T(1,128)}', space=vmem, size = 0x9000, scoped, tag = 'internal scratch']
  %s0 = inlined_call_operand.vmem [shape: bf16[16,32], index: 0, kind: input, shape index: {}]
  %s1 = inlined_call_operand.vmem [shape: bf16[16,16], index: 1, kind: input, shape index: {}]
  %s2 = inlined_call_operand.vmem [shape: bf16[32,32], index: 2, kind: input, shape index: {}]
  %s3 = inlined_call_operand.vmem [shape: f32[1,32], index: 3, kind: input, shape index: {}]
  %s4 = inlined_call_operand.vmem [shape: bf16[16,32], index: 4, kind: input, shape index: {}]
  %s5 = inlined_call_operand.vmem [shape: f32[1,32], index: 5, kind: input, shape index: {}]
  %s6 = inlined_call_operand.vmem [shape: bf16[32,32], index: 6, kind: input, shape index: {}]
  %s7 = inlined_call_operand.vmem [shape: f32[1,32], index: 7, kind: input, shape index: {}]
  %s8 = inlined_call_operand.vmem [shape: bf16[32,32], index: 8, kind: input, shape index: {}]
  %s9 = inlined_call_operand.vmem [shape: f32[1,32], index: 9, kind: input, shape index: {}]
  %s10 = inlined_call_operand.vmem [shape: f32[64,32], index: 10, kind: input, shape index: {}]
  %s11 = inlined_call_operand.vmem [shape: f32[64,32], index: 11, kind: input, shape index: {}]
  %s12 = inlined_call_operand.vmem [shape: f32[64,16], index: 12, kind: input, shape index: {}]
  %s13 = inlined_call_operand.hbm [shape: f32[16,32], index: 13, kind: output, shape index: {}]
  %s14 = sld [smem:[#allocation0]]
  $region62: #{tpu_custom_call.1} parent=0
    _
  %s16 = ssub.s32 1, %s14
  %s17 = scalar_select 0, %s16, %s14
  $region1: #{tpu_custom_call.1} parent=0
    #allocation2 [shape = 'u8[8192]{0}', space=vmem, size = 0x2000, scoped, tag = 'output window, operand 0, single buffered']
    #allocation3 [shape = 's32[1]{0}', space=sflag, size = 0x4, scoped, tag = 'scoped memory for tpu_custom_call.1']
    %18 = vsyncpa [#allocation3], 0
    // Predicated region
    $region2: #{tpu_custom_call.1} parent=1 // pred_check
      _
    $region3: #{tpu_custom_call.1} parent=1 // pred_check_branch
      %20 = sbr.rel (0) target = $region5
    $region4: #{tpu_custom_call.1} parent=1 // pred_region
      _
    $region5: #{tpu_custom_call.1} parent=1 // pred_fallthru
      _
    // Predicated region
    $region6: #{tpu_custom_call.1} parent=1 // pred_check
      _
    $region7: #{tpu_custom_call.1} parent=1 // pred_check_branch
      %22 = sbr.rel (0) target = $region9
    $region8: #{tpu_custom_call.1} parent=1 // pred_region
      _
    $region9: #{tpu_custom_call.1} parent=1 // pred_fallthru
      _
    // Predicated region
    $region10: #{tpu_custom_call.1} parent=1 // pred_check
      _
    $region11: #{tpu_custom_call.1} parent=1 // pred_check_branch
      %24 = sbr.rel (0) target = $region13
    $region12: #{tpu_custom_call.1} parent=1 // pred_region
      _
    $region13: #{tpu_custom_call.1} parent=1 // pred_fallthru
      _
    // Predicated region
    $region14: #{tpu_custom_call.1} parent=1 // pred_check
      _
    $region15: #{tpu_custom_call.1} parent=1 // pred_check_branch
      %26 = sbr.rel (0) target = $region17
    $region16: #{tpu_custom_call.1} parent=1 // pred_region
      _
    $region17: #{tpu_custom_call.1} parent=1 // pred_fallthru
      _
    // Predicated region
    $region18: #{tpu_custom_call.1} parent=1 // pred_check
      _
    $region19: #{tpu_custom_call.1} parent=1 // pred_check_branch
      %28 = sbr.rel (0) target = $region21
    $region20: #{tpu_custom_call.1} parent=1 // pred_region
      _
    $region21: #{tpu_custom_call.1} parent=1 // pred_fallthru
      _
    // Predicated region
    $region22: #{tpu_custom_call.1} parent=1 // pred_check
      _
    $region23: #{tpu_custom_call.1} parent=1 // pred_check_branch
      %30 = sbr.rel (0) target = $region25
    $region24: #{tpu_custom_call.1} parent=1 // pred_region
      _
    $region25: #{tpu_custom_call.1} parent=1 // pred_fallthru
      _
    // Predicated region
    $region26: #{tpu_custom_call.1} parent=1 // pred_check
      _
    $region27: #{tpu_custom_call.1} parent=1 // pred_check_branch
      %32 = sbr.rel (0) target = $region29
    $region28: #{tpu_custom_call.1} parent=1 // pred_region
      _
    $region29: #{tpu_custom_call.1} parent=1 // pred_fallthru
      _
    // Predicated region
    $region30: #{tpu_custom_call.1} parent=1 // pred_check
      _
    $region31: #{tpu_custom_call.1} parent=1 // pred_check_branch
      %34 = sbr.rel (0) target = $region33
    $region32: #{tpu_custom_call.1} parent=1 // pred_region
      _
    $region33: #{tpu_custom_call.1} parent=1 // pred_fallthru
      _
    // Predicated region
    $region34: #{tpu_custom_call.1} parent=1 // pred_check
      _
    $region35: #{tpu_custom_call.1} parent=1 // pred_check_branch
      %36 = sbr.rel (0) target = $region37
    $region36: #{tpu_custom_call.1} parent=1 // pred_region
      _
    $region37: #{tpu_custom_call.1} parent=1 // pred_fallthru
      _
    // Predicated region
    $region38: #{tpu_custom_call.1} parent=1 // pred_check
      _
    $region39: #{tpu_custom_call.1} parent=1 // pred_check_branch
      %38 = sbr.rel (0) target = $region41
    $region40: #{tpu_custom_call.1} parent=1 // pred_region
      _
    $region41: #{tpu_custom_call.1} parent=1 // pred_fallthru
      _
    // Predicated region
    $region42: #{tpu_custom_call.1} parent=1 // pred_check
      _
    $region43: #{tpu_custom_call.1} parent=1 // pred_check_branch
      %40 = sbr.rel (0) target = $region45
    $region44: #{tpu_custom_call.1} parent=1 // pred_region
      _
    $region45: #{tpu_custom_call.1} parent=1 // pred_fallthru
      _
    // Predicated region
    $region46: #{tpu_custom_call.1} parent=1 // pred_check
      _
    $region47: #{tpu_custom_call.1} parent=1 // pred_check_branch
      %42 = sbr.rel (0) target = $region49
    $region48: #{tpu_custom_call.1} parent=1 // pred_region
      _
    $region49: #{tpu_custom_call.1} parent=1 // pred_fallthru
      _
    // Predicated region
    $region50: #{tpu_custom_call.1} parent=1 // pred_check
      _
    $region51: #{tpu_custom_call.1} parent=1 // pred_check_branch
      %44 = sbr.rel (0) target = $region53
    $region52: #{tpu_custom_call.1} parent=1 // pred_region
      _
    $region53: #{tpu_custom_call.1} parent=1 // pred_fallthru
      _
    %v46 = vld [vmem:[%s0] sm:$0xf]
    %v47 = vld [vmem:[%s0 + $0x4] sm:$0xf]
    %v48 = vld [vmem:[%s1] sm:$0xf]
    %v49 = vld [vmem:[%s1 + $0x4] sm:$0xf]
    %v50 = vld [vmem:[%s2] sm:$0xf]
    %v51 = vld [vmem:[%s2 + $0x4] sm:$0xf]
    %v52 = vld [vmem:[%s2 + $0x8] sm:$0xf]
    %v53 = vld [vmem:[%s2 + $0xc] sm:$0xf]
    %v54 = vld [vmem:[%s3] sm:$0x1]
    %v56 = vperm.slane %v54, 0
    %v60 = vunpack.c.l.b16 %v46
    %v61 = vunpack.c.l.b16 %v47
    %v62 = vpack.c.b16 %v61, %v60
    %v67 = vunpack.c.l.b16 %v50
    %v68 = vunpack.c.l.b16 %v51
    %v69 = vunpack.c.l.b16 %v52
    %v70 = vunpack.c.l.b16 %v53
    %v71 = vpack.c.b16 %v68, %v67
    %v72 = vpack.c.b16 %v70, %v69
    %vm75 = vcmask 261120
    %v77 = vsel %vm75, %v62, 0
    %79 = vmatpush.bf16.msra.mxu0 0
    %80 = vmatpush.bf16.msra.mxu0 0
    %81 = vmatpush.bf16.msra.mxu0 0
    %82 = vmatpush.bf16.msra.mxu0 0
    %83 = vmatpush.bf16.msra.mxu0 0
    %84 = vmatpush.bf16.msra.mxu0 0
    %85 = vmatpush.bf16.msra.mxu0 %v72
    %86 = vmatpush.bf16.msra.mxu0 %v71
    %87 = vmatmul.bf16.gmra.mxu0 %v77
    %v88 = vpop.f32.mrf.mxu0
    %v89 = vadd.f32 %v56, %v88
    %v90 = vpop.f32.mrf.mxu0
    %v91 = vadd.f32 %v56, %v90
    %92 = vdwg.mxu0
    %v93 = vld [vmem:[%s4] sm:$0xf]
    %v94 = vld [vmem:[%s4 + $0x4] sm:$0xf]
    %v95 = vld [vmem:[%s5] sm:$0x1]
    %v97 = vperm.slane %v95, 0
    %v101 = vunpack.c.l.b16 %v48
    %v102 = vunpack.c.l.b16 %v49
    %v103 = vpack.c.b16 %v102, %v101
    %v106 = vunpack.c.l.b16 %v93
    %v107 = vunpack.c.l.b16 %v94
    %v108 = vpack.c.b16 %v107, %v106
    %vm110 = vcmask 130048
    %v112 = vsel %vm110, %v103, 0
    %114 = vmatpush.bf16.msra.mxu0 0
    %115 = vmatpush.bf16.msra.mxu0 0
    %116 = vmatpush.bf16.msra.mxu0 0
    %117 = vmatpush.bf16.msra.mxu0 0
    %118 = vmatpush.bf16.msra.mxu0 0
    %119 = vmatpush.bf16.msra.mxu0 0
    %120 = vmatpush.bf16.msra.mxu0 0
    %121 = vmatpush.bf16.msra.mxu0 %v108
    %122 = vmatmul.bf16.gmra.mxu0 %v112
    %v123 = vpop.f32.mrf.mxu0
    %v124 = vadd.f32 %v97, %v123
    %v125 = vpop.f32.mrf.mxu0
    %v126 = vadd.f32 %v97, %v125
    %127 = vdwg.mxu0
    %v128 = vld [vmem:[%s6] sm:$0xf]
    %v129 = vld [vmem:[%s6 + $0x4] sm:$0xf]
    %v130 = vld [vmem:[%s6 + $0x8] sm:$0xf]
    %v131 = vld [vmem:[%s6 + $0xc] sm:$0xf]
    %v132 = vld [vmem:[%s7] sm:$0x1]
    %v134 = vperm.slane %v132, 0
    %v140 = vunpack.c.l.b16 %v128
    %v141 = vunpack.c.l.b16 %v129
    %v142 = vunpack.c.l.b16 %v130
    %v143 = vunpack.c.l.b16 %v131
    %v144 = vpack.c.b16 %v141, %v140
    %v145 = vpack.c.b16 %v143, %v142
    %148 = vmatpush.bf16.msra.mxu0 0
    %149 = vmatpush.bf16.msra.mxu0 0
    %150 = vmatpush.bf16.msra.mxu0 0
    %151 = vmatpush.bf16.msra.mxu0 0
    %152 = vmatpush.bf16.msra.mxu0 0
    %153 = vmatpush.bf16.msra.mxu0 0
    %154 = vmatpush.bf16.msra.mxu0 %v145
    %155 = vmatpush.bf16.msra.mxu0 %v144
    %156 = vmatmul.bf16.gmra.mxu0 %v77
    %v157 = vpop.f32.mrf.mxu0
    %v158 = vadd.f32 %v134, %v157
    %v159 = vpop.f32.mrf.mxu0
    %v160 = vadd.f32 %v134, %v159
    %161 = vdwg.mxu0
    %v162 = vld [vmem:[%s10] sm:$0xff]
    %v163 = vld [vmem:[%s10 + $0x8] sm:$0xff]
    %v164 = vld [vmem:[%s10 + $0x10] sm:$0xff]
    %v165 = vld [vmem:[%s10 + $0x18] sm:$0xff]
    %v166 = vld [vmem:[%s10 + $0x20] sm:$0xff]
    %v167 = vld [vmem:[%s10 + $0x28] sm:$0xff]
    %v168 = vld [vmem:[%s10 + $0x30] sm:$0xff]
    %v169 = vld [vmem:[%s10 + $0x38] sm:$0xff]
    %v170 = vmul.f32 %v124, %v162
    %v171 = vmul.f32 %v126, %v163
    %v172 = vmul.f32 %v124, %v164
    %v173 = vmul.f32 %v126, %v165
    %v174 = vmul.f32 %v124, %v166
    %v175 = vmul.f32 %v126, %v167
    %v176 = vmul.f32 %v124, %v168
    %v177 = vmul.f32 %v126, %v169
    %v178 = vpack.c.bf16 %v171, %v170
    %v179 = vpack.c.bf16 %v173, %v172
    %v180 = vpack.c.bf16 %v175, %v174
    %v181 = vpack.c.bf16 %v177, %v176
    %v182 = vpack.c.bf16 %v91, %v89
    %v183 = vld [vmem:[%s12] sm:$0xff]
    %v184 = vld [vmem:[%s12 + $0x8] sm:$0xff]
    %v185 = vld [vmem:[%s12 + $0x10] sm:$0xff]
    %v186 = vld [vmem:[%s12 + $0x18] sm:$0xff]
    %v187 = vld [vmem:[%s12 + $0x20] sm:$0xff]
    %v188 = vld [vmem:[%s12 + $0x28] sm:$0xff]
    %v189 = vld [vmem:[%s12 + $0x30] sm:$0xff]
    %v190 = vld [vmem:[%s12 + $0x38] sm:$0xff]
    %v192 = vsel %vm75, %v178, 0
    %v195 = vsel %vm75, %v179, 0
    %v198 = vsel %vm75, %v180, 0
    %v201 = vsel %vm75, %v181, 0
    %v204 = vsel %vm75, %v182, 0
    %206 = vmatpush.bf16.xpose.msra.mxu0 0
    %207 = vmatpush.bf16.xpose.msra.mxu0 0
    %208 = vmatpush.bf16.xpose.msra.mxu0 0
    %209 = vmatpush.bf16.xpose.msra.mxu0 0
    %210 = vmatpush.bf16.xpose.msra.mxu0 0
    %211 = vmatpush.bf16.xpose.msra.mxu0 0
    %212 = vmatpush.bf16.xpose.msra.mxu0 0
    %213 = vmatpush.bf16.xpose.msra.mxu0 %v204
    %214 = vmatmul.bf16.gmra.mxu0 %v192
    %v215 = vpop.f32.mrf.mxu0
    %v216 = vadd.f32 %v183, %v215
    %v217 = vpop.f32.mrf.mxu0
    %v218 = vadd.f32 %v184, %v217
    %219 = vmatmul.bf16.gmra.mxu0 %v195
    %v220 = vpop.f32.mrf.mxu0
    %v221 = vadd.f32 %v185, %v220
    %v222 = vpop.f32.mrf.mxu0
    %v223 = vadd.f32 %v186, %v222
    %224 = vmatmul.bf16.gmra.mxu0 %v198
    %v225 = vpop.f32.mrf.mxu0
    %v226 = vadd.f32 %v187, %v225
    %v227 = vpop.f32.mrf.mxu0
    %v228 = vadd.f32 %v188, %v227
    %229 = vmatmul.bf16.gmra.mxu0 %v201
    %v230 = vpop.f32.mrf.mxu0
    %v231 = vadd.f32 %v189, %v230
    %v232 = vpop.f32.mrf.mxu0
    %v233 = vadd.f32 %v190, %v232
    %234 = vdwg.mxu0
    %v235 = vsel %vm110, %v216, -inf
    %236 = vmax.xlane.f32.xlu0 %v235
    %v237 = vpop.xlane.xlu0 %236
    %v238 = vsel %vm110, %v218, -inf
    %239 = vmax.xlane.f32.xlu0 %v238
    %v240 = vpop.xlane.xlu0 %239
    %v241 = vsel %vm110, %v221, -inf
    %242 = vmax.xlane.f32.xlu0 %v241
    %v243 = vpop.xlane.xlu0 %242
    %v244 = vsel %vm110, %v223, -inf
    %245 = vmax.xlane.f32.xlu0 %v244
    %v246 = vpop.xlane.xlu0 %245
    %v247 = vsel %vm110, %v226, -inf
    %248 = vmax.xlane.f32.xlu0 %v247
    %v249 = vpop.xlane.xlu0 %248
    %v250 = vsel %vm110, %v228, -inf
    %251 = vmax.xlane.f32.xlu0 %v250
    %v252 = vpop.xlane.xlu0 %251
    %v253 = vsel %vm110, %v231, -inf
    %254 = vmax.xlane.f32.xlu0 %v253
    %v255 = vpop.xlane.xlu0 %254
    %v256 = vsel %vm110, %v233, -inf
    %257 = vmax.xlane.f32.xlu0 %v256
    %v258 = vpop.xlane.xlu0 %257
    %v259 = vsub.f32 %v216, %v237
    %v260 = vsub.f32 %v218, %v240
    %v261 = vsub.f32 %v221, %v243
    %v262 = vsub.f32 %v223, %v246
    %v263 = vsub.f32 %v226, %v249
    %v264 = vsub.f32 %v228, %v252
    %v265 = vsub.f32 %v231, %v255
    %v266 = vsub.f32 %v233, %v258
    %v267 = vmul.f32 %v259, 1.442695
    %v268 = vpow.pop %v267
    %v269 = vmul.f32 %v260, 1.442695
    %v270 = vpow.pop %v269
    %v271 = vmul.f32 %v261, 1.442695
    %v272 = vpow.pop %v271
    %v273 = vmul.f32 %v262, 1.442695
    %v274 = vpow.pop %v273
    %v275 = vmul.f32 %v263, 1.442695
    %v276 = vpow.pop %v275
    %v277 = vmul.f32 %v264, 1.442695
    %v278 = vpow.pop %v277
    %v279 = vmul.f32 %v265, 1.442695
    %v280 = vpow.pop %v279
    %v281 = vmul.f32 %v266, 1.442695
    %v282 = vpow.pop %v281
    %v283 = vsel %vm110, %v268, 0.0
    %284 = vadd.xlane.f32.xlu0 %v283
    %v285 = vpop.xlane.xlu0 %284
    %v286 = vsel %vm110, %v270, 0.0
    %287 = vadd.xlane.f32.xlu0 %v286
    %v288 = vpop.xlane.xlu0 %287
    %v289 = vsel %vm110, %v272, 0.0
    %290 = vadd.xlane.f32.xlu0 %v289
    %v291 = vpop.xlane.xlu0 %290
    %v292 = vsel %vm110, %v274, 0.0
    %293 = vadd.xlane.f32.xlu0 %v292
    %v294 = vpop.xlane.xlu0 %293
    %v295 = vsel %vm110, %v276, 0.0
    %296 = vadd.xlane.f32.xlu0 %v295
    %v297 = vpop.xlane.xlu0 %296
    %v298 = vsel %vm110, %v278, 0.0
    %299 = vadd.xlane.f32.xlu0 %v298
    %v300 = vpop.xlane.xlu0 %299
    %v301 = vsel %vm110, %v280, 0.0
    %302 = vadd.xlane.f32.xlu0 %v301
    %v303 = vpop.xlane.xlu0 %302
    %v304 = vsel %vm110, %v282, 0.0
    %305 = vadd.xlane.f32.xlu0 %v304
    %v306 = vpop.xlane.xlu0 %305
    %v307 = vrcp.pop %v285
    %v308 = vrcp.pop %v288
    %v309 = vrcp.pop %v291
    %v310 = vrcp.pop %v294
    %v311 = vrcp.pop %v297
    %v312 = vrcp.pop %v300
    %v313 = vrcp.pop %v303
    %v314 = vrcp.pop %v306
    %v315 = vmul.f32 %v268, %v307
    %v316 = vmul.f32 %v270, %v308
    %v317 = vmul.f32 %v272, %v309
    %v318 = vmul.f32 %v274, %v310
    %v319 = vmul.f32 %v276, %v311
    %v320 = vmul.f32 %v278, %v312
    %v321 = vmul.f32 %v280, %v313
    %v322 = vmul.f32 %v282, %v314
    %v324 = vsel %vm110, %v315, 0
    %v327 = vsel %vm110, %v316, 0
    %v330 = vsel %vm110, %v317, 0
    %v333 = vsel %vm110, %v318, 0
    %v336 = vsel %vm110, %v319, 0
    %v339 = vsel %vm110, %v320, 0
    %v342 = vsel %vm110, %v321, 0
    %v345 = vsel %vm110, %v322, 0
    %347 = vmatpush.msra.mxu0 0.0
    %348 = vmatpush.msra.mxu0 0.0
    %349 = vmatpush.msra.mxu0 0.0
    %350 = vmatpush.msra.mxu0 0.0
    %351 = vmatpush.msra.mxu0 0.0
    %352 = vmatpush.msra.mxu0 0.0
    %353 = vmatpush.msra.mxu0 0.0
    %354 = vmatpush.msra.mxu0 0.0
    %355 = vmatpush.msra.mxu0 0.0
    %356 = vmatpush.msra.mxu0 0.0
    %357 = vmatpush.msra.mxu0 0.0
    %358 = vmatpush.msra.mxu0 0.0
    %359 = vmatpush.msra.mxu0 0.0
    %360 = vmatpush.msra.mxu0 0.0
    %361 = vmatpush.msra.mxu0 %v160
    %362 = vmatpush.msra.mxu0 %v158
    %363 = vmatmul.f32.gmra.mxu0 %v324
    %v364 = vpop.f32.mrf.mxu0
    %v365 = vadd.f32 0.0, %v364
    %366 = vmatmul.f32.gmra.mxu0 %v327
    %v367 = vpop.f32.mrf.mxu0
    %v368 = vadd.f32 0.0, %v367
    %369 = vmatmul.f32.gmra.mxu0 %v330
    %v370 = vpop.f32.mrf.mxu0
    %v371 = vadd.f32 0.0, %v370
    %372 = vmatmul.f32.gmra.mxu0 %v333
    %v373 = vpop.f32.mrf.mxu0
    %v374 = vadd.f32 0.0, %v373
    %375 = vmatmul.f32.gmra.mxu0 %v336
    %v376 = vpop.f32.mrf.mxu0
    %v377 = vadd.f32 0.0, %v376
    %378 = vmatmul.f32.gmra.mxu0 %v339
    %v379 = vpop.f32.mrf.mxu0
    %v380 = vadd.f32 0.0, %v379
    %381 = vmatmul.f32.gmra.mxu0 %v342
    %v382 = vpop.f32.mrf.mxu0
    %v383 = vadd.f32 0.0, %v382
    %384 = vmatmul.f32.gmra.mxu0 %v345
    %v385 = vpop.f32.mrf.mxu0
    %v386 = vadd.f32 0.0, %v385
    %387 = vdwg.mxu0
    %v388 = vld [vmem:[%s11] sm:$0xff]
    %v389 = vld [vmem:[%s11 + $0x8] sm:$0xff]
    %v390 = vld [vmem:[%s11 + $0x10] sm:$0xff]
    %v391 = vld [vmem:[%s11 + $0x18] sm:$0xff]
    %v392 = vld [vmem:[%s11 + $0x20] sm:$0xff]
    %v393 = vld [vmem:[%s11 + $0x28] sm:$0xff]
    %v394 = vld [vmem:[%s11 + $0x30] sm:$0xff]
    %v395 = vld [vmem:[%s11 + $0x38] sm:$0xff]
    %v396 = vmul.f32 %v365, %v388
    %v397 = vmul.f32 %v368, %v389
    %v398 = vmul.f32 %v371, %v390
    %v399 = vmul.f32 %v374, %v391
    %v400 = vmul.f32 %v377, %v392
    %v401 = vmul.f32 %v380, %v393
    %v402 = vmul.f32 %v383, %v394
    %v403 = vmul.f32 %v386, %v395
    %v404 = vadd.f32 %v396, %v398
    %v405 = vadd.f32 %v397, %v399
    %v406 = vadd.f32 %v404, %v400
    %v407 = vadd.f32 %v405, %v401
    %v408 = vadd.f32 %v406, %v402
    %v409 = vadd.f32 %v407, %v403
    %v410 = vld [vmem:[%s8] sm:$0xf]
    %v411 = vld [vmem:[%s8 + $0x4] sm:$0xf]
    %v412 = vld [vmem:[%s8 + $0x8] sm:$0xf]
    %v413 = vld [vmem:[%s8 + $0xc] sm:$0xf]
    %v414 = vunpack.c.l.bf16 %v410
    %v415 = vunpack.c.l.bf16 %v411
    %v416 = vunpack.c.l.bf16 %v412
    %v417 = vunpack.c.l.bf16 %v413
    %v418 = vld [vmem:[%s9] sm:$0x1]
    %v420 = vperm.slane %v418, 0
    %v423 = vsel %vm75, %v408, 0
    %v426 = vsel %vm75, %v409, 0
    %428 = vmatpush.msra.mxu0 0.0
    %429 = vmatpush.msra.mxu0 0.0
    %430 = vmatpush.msra.mxu0 0.0
    %431 = vmatpush.msra.mxu0 0.0
    %432 = vmatpush.msra.mxu0 0.0
    %433 = vmatpush.msra.mxu0 0.0
    %434 = vmatpush.msra.mxu0 0.0
    %435 = vmatpush.msra.mxu0 0.0
    %436 = vmatpush.msra.mxu0 0.0
    %437 = vmatpush.msra.mxu0 0.0
    %438 = vmatpush.msra.mxu0 0.0
    %439 = vmatpush.msra.mxu0 0.0
    %440 = vmatpush.msra.mxu0 %v417
    %441 = vmatpush.msra.mxu0 %v416
    %442 = vmatpush.msra.mxu0 %v415
    %443 = vmatpush.msra.mxu0 %v414
    %444 = vmatmul.f32.gmra.mxu0 %v423
    %v445 = vpop.f32.mrf.mxu0
    %v446 = vadd.f32 %v420, %v445
    %447 = vmatmul.f32.gmra.mxu0 %v426
    %v448 = vpop.f32.mrf.mxu0
    %v449 = vadd.f32 %v420, %v448
    %450 = vdwg.mxu0
    %451 = vst.msk [vmem:[#allocation2] sm:$0xff] %vm75, %v446
    %452 = vst.msk [vmem:[#allocation2 + $0x8] sm:$0xff] %vm75, %v449
    // Predicated region
    $region54: #{tpu_custom_call.1} parent=1 // pred_check
      _
    $region55: #{tpu_custom_call.1} parent=1 // pred_check_branch
      %454 = sbr.rel (0) target = $region57
    $region56: #{tpu_custom_call.1} parent=1 // pred_region
      %456 = vsyncadd [#allocation3], 0
      %s457 = sshll.u32 [#allocation2], 4
      %s458 = int_to_ptr.vmem [resolvable:$true] %s457
      %s459 = sshll.u32 %s13, 4
      %s460 = int_to_ptr.hbm [resolvable:$true] %s459
      %465 = dma.vmem_to_hbm [thread:$0]  %s458, 256, %s460, [#allocation3], 128, 128, 8
    $region57: #{tpu_custom_call.1} parent=1 // pred_fallthru
      _
    // Predicated region
    $region58: #{tpu_custom_call.1} parent=1 // pred_check
      _
    $region59: #{tpu_custom_call.1} parent=1 // pred_check_branch
      %467 = sbr.rel (0) target = $region61
    $region60: #{tpu_custom_call.1} parent=1 // pred_region
      %469 = dma.done [#allocation3], 256
    $region61: #{tpu_custom_call.1} parent=1 // pred_fallthru
      _
    %470 = vsyncpa [#allocation3], 1

</llo_original>
